<compile_context>
chip_gen: v5e
topology: v5e:2x2
jax: 0.10.0
libtpu: 0.0.40
codegen_flags: <defaults>
</compile_context>

<pallas_src>
import numpy as np
import jax
import jax.numpy as jnp
from jax.experimental import pallas as pl
from jax.experimental.pallas import tpu as pltpu


def _vmem_budget_bytes():
    """Generation-aware VMEM budget (~75% of physical: ~96 MiB on v5e/v6e, ~48 MiB on v7x)."""
    try:
        cap = int(pltpu.get_tpu_info().vmem_capacity_bytes)
    except Exception:
        cap = 64 * 1024 * 1024
    return min(cap * 3 // 4, 100 * 1024 * 1024)


# ---------------------------------------------------------------------------
# Lane-dense flat kernel: output (N, N*N) int8.  Used for small power-of-two N.
# ---------------------------------------------------------------------------
def _triangle_flat_kernel(ep_ref, f_ref, a_rows_ref, at_rows_ref, o_ref):
    """Single-step lane-dense kernel: out[i, j*N + k] = A[i,j] & A[j,k] & A[k,i].

    ep_ref      : (N, N*N) bf16  E'[j, m] = [j == m//N] * (A[m//N, m%N] != 0)  (A[j,k] folded in)
    f_ref       : (N, N*N) bf16  F [k, m] = [k == m% N]
    a_rows_ref  : (N, N)   int8  A     -> A[i, j] term
    at_rows_ref : (N, N)   int8  A^T   -> A[k, i] term
    o_ref       : (N, N*N) int8  cycle mask
    """
    aij = (a_rows_ref[...] != 0).astype(jnp.bfloat16)            # (N, N)
    aki = (at_rows_ref[...] != 0).astype(jnp.bfloat16)           # (N, N)
    # One-hot MXU expansion straight into the lane-dense flat (j,k) layout; operands are exactly
    # 0/1 so the bf16 matmuls (f32 accumulate) are exact.
    aij_ajk = jnp.dot(aij, ep_ref[...], preferred_element_type=jnp.float32)  # A[i,j(m)]*A[j(m),k(m)]
    aki_exp = jnp.dot(aki, f_ref[...], preferred_element_type=jnp.float32)   # A[k(m), i]
    o_ref[...] = jnp.logical_and(aij_ajk > 0.5, aki_exp > 0.5).astype(jnp.int8)


def _triangle_mask_flat(adj_bool_np, a_i8, at_i8):
    n = a_i8.shape[0]
    nn = n * n

    # Host-precomputed one-hot expansion matrices (exactly 0/1); A[j,k] is folded into E'.
    m = np.arange(nn)
    rows = np.arange(n)[:, None]
    ep_np = ((rows == (m // n)[None, :]) & adj_bool_np.reshape(-1)[None, :]).astype(np.float32)
    f_np = (rows == (m % n)[None, :]).astype(np.float32)
    ep_bf = jnp.asarray(ep_np, jnp.bfloat16)
    f_bf = jnp.asarray(f_np, jnp.bfloat16)

    return pl.pallas_call(
        _triangle_flat_kernel,
        out_shape=jax.ShapeDtypeStruct((n, nn), jnp.int8),
        grid_spec=pltpu.PrefetchScalarGridSpec(
            num_scalar_prefetch=0,
            # One grid step: N <= 64 so the whole (N, N*N) int8 output is one (32,128)-aligned,
            # lane/sublane-dense store; avoids per-step overhead on single-TC generations.
            grid=(1,),
            in_specs=[
                pl.BlockSpec((n, nn), lambda i: (0, 0)),
                pl.BlockSpec((n, nn), lambda i: (0, 0)),
                pl.BlockSpec((n, n), lambda i: (0, 0)),
                pl.BlockSpec((n, n), lambda i: (0, 0)),
            ],
            out_specs=pl.BlockSpec((n, nn), lambda i: (0, 0)),
        ),
        compiler_params=pltpu.CompilerParams(
            dimension_semantics=("arbitrary",),
            vmem_limit_bytes=_vmem_budget_bytes(),
        ),
    )(ep_bf, f_bf, a_i8, at_i8)


# ---------------------------------------------------------------------------
# General blocked 3-D fallback: output (N, N, N) int8, 2-D grid over (i-block, j-block).
# ---------------------------------------------------------------------------
def _triangle_3d_kernel(aij_ref, ajk_ref, aki_ref, o_ref):
    """out[i, j, k] = A[i,j] & A[j,k] & A[k,i] for one (i-block, j-block) tile.

    aij_ref : (BI, BJ) int8  A[i, j] tile
    ajk_ref : (BJ, N)  int8  A[j, :] rows
    aki_ref : (BI, N)  int8  A^T[i, :] rows (A[k, i] term)
    o_ref   : (BI, BJ, N) int8
    """
    aij = aij_ref[...] != 0
    ajk = ajk_ref[...] != 0
    aki = aki_ref[...] != 0
    tri = jnp.logical_and(jnp.logical_and(aij[:, :, None], ajk[None, :, :]), aki[:, None, :])
    o_ref[...] = tri.astype(jnp.int8)


def _pick_blocks_3d(n, budget):
    # j-block: full N when small (single lane-dense slab), else 128 (multiple of 128 so the
    # (BI, BJ) aij tile satisfies the lane constraint; cdiv handles ragged edges).
    bj = n if n <= 128 else 128
    if n <= 128:
        cands = [n]                                   # whole problem fits one block
    else:
        hi = min(512, (n // 8) * 8)
        cands = list(range(8, hi + 1, 8))
    best = cands[0]
    for bi in cands:
        # double-buffered int8 output tile + conservative 12 B/elem for in-kernel temporaries
        need = 14 * bi * bj * n + 4 * (bj * n + bi * n + bi * bj)
        if need <= budget:
            best = bi
    return best, bj


def _triangle_mask_3d(a_i8, at_i8):
    n = a_i8.shape[0]
    if n > 2048:
        # TODO(synk): bit-pack the mask along k and compact triangles on-device for n > 2048;
        # the dense n^3 int8 mask (and its host copy) stops fitting in memory around there.
        raise ValueError("TriangleIndexes Pallas fallback supports n <= 2048 (dense n^3 mask)")
    budget = _vmem_budget_bytes()
    bi, bj = _pick_blocks_3d(n, budget)
    return pl.pallas_call(
        _triangle_3d_kernel,
        out_shape=jax.ShapeDtypeStruct((n, n, n), jnp.int8),
        grid_spec=pltpu.PrefetchScalarGridSpec(
            num_scalar_prefetch=0,
            grid=(pl.cdiv(n, bi), pl.cdiv(n, bj)),
            in_specs=[
                pl.BlockSpec((bi, bj), lambda i, j: (i, j)),   # A[i, j] tile
                pl.BlockSpec((bj, n), lambda i, j: (j, 0)),    # A[j, :] rows
                pl.BlockSpec((bi, n), lambda i, j: (i, 0)),    # A^T[i, :] rows (constant in j)
            ],
            out_specs=pl.BlockSpec((bi, bj, n), lambda i, j: (i, j, 0)),
        ),
        compiler_params=pltpu.CompilerParams(
            dimension_semantics=("parallel", "parallel"),
            vmem_limit_bytes=budget,
        ),
    )(a_i8, a_i8, at_i8)


def triangle_cycle_mask(adj_bool_np, a_i8, at_i8):
    """Dense directed-3-cycle mask with axes (i, j, k); int8, shape (N, N*N) or (N, N, N)."""
    n = a_i8.shape[0]
    if 16 <= n <= 64 and (n & (n - 1)) == 0:          # small power-of-two N -> lane-dense flat kernel
        return _triangle_mask_flat(adj_bool_np, a_i8, at_i8)
    return _triangle_mask_3d(a_i8, at_i8)


def triangle_indexes(adjacency_matrix):
    """Forward pass equivalent of TriangleIndexes.forward.

    Returns the unique, row-sorted triangle index triples (T, 3) as int64
    (same values / ordering / dtype as the torch module's output).
    """
    adj_np = np.asarray(adjacency_matrix)             # single host copy, reused for E'/F + degree check
    n = adj_np.shape[0]
    adj_bool = adj_np != 0

    # The torch code's `.reshape(N, 15, 2)` implicitly requires exactly 15 nonzeros per row.
    assert (adj_bool.sum(axis=1) == 15).all(), "each adjacency row must have exactly 15 nonzeros"

    a_i8 = jnp.asarray(adj_bool.astype(np.int8))      # int8 adjacency: 4x less HBM->VMEM DMA
    at_i8 = jnp.asarray(adj_bool.T.astype(np.int8))

    # Hot path (the N^3 cycle mask) in Pallas.
    mask = jax.block_until_ready(triangle_cycle_mask(adj_bool, a_i8, at_i8))

    # TODO(synk): torch.nonzero / torch.sort / torch.unique have data-dependent output shapes with
    # no static-shape Pallas equivalent; this extraction stays on the host.
    m3 = np.asarray(mask).reshape(n, n, n)            # (i, j, k) cycle mask, int8
    trips = np.argwhere(m3 != 0).astype(np.int64)     # directed cycles (i, j, k)
    trips = np.sort(trips, axis=-1)
    return np.unique(trips, axis=0)                   # lexicographically sorted unique rows


def _reference_numpy(adj_np):
    """Faithful numpy transcription of the torch forward (for verification)."""
    n = adj_np.shape[0]
    nz = np.argwhere(adj_np != 0)                     # row-major order, like torch.nonzero
    n1 = nz.reshape(n, 15, 2)[:, :, 1]
    n2 = n1[n1]
    n3 = n1[n2]
    vals = np.arange(n).reshape(n, 1, 1, 1)
    ind = np.argwhere(n3 == vals)
    i, j, k, _l = ind[:, 0], ind[:, 1], ind[:, 2], ind[:, 3]
    trips = np.stack([i, n1[i, j], n2[i, j, k]], axis=1)
    trips = np.sort(trips, axis=-1)
    return np.unique(trips, axis=0)


def _circulant_degree15(n, offsets, seed):
    """Deterministic degree-15 digraph: circulant with the given offsets + PRNGKey(seed) relabeling."""
    idx = np.arange(n)
    adj = np.zeros((n, n), np.float32)
    adj[idx[:, None], (idx[:, None] + offsets[None, :]) % n] = 1.0
    perm = np.asarray(jax.random.permutation(jax.random.PRNGKey(seed), n))
    return adj[perm][:, perm]


if __name__ == "__main__":
    # N = 32: small power-of-two -> lane-dense flat (N, N*N) kernel path.
    offsets32 = np.array([1, 2, 3, 4, 5, 6, 7, 25, 26, 27, 28, 29, 30, 31, 16], np.int64)
    adj32 = _circulant_degree15(32, offsets32, seed=0)
    tri32 = triangle_indexes(jnp.asarray(adj32))      # (T, 3) int64
    ref32 = _reference_numpy(adj32)
    assert tri32.shape[1] == 3 and tri32.dtype == np.int64
    assert np.array_equal(tri32, ref32), "flat-path mismatch vs torch-semantics reference"

    # N = 48: non power-of-two -> general blocked 3-D kernel path.
    adj48 = _circulant_degree15(48, np.arange(1, 16, dtype=np.int64), seed=0)
    tri48 = triangle_indexes(jnp.asarray(adj48))
    ref48 = _reference_numpy(adj48)
    assert np.array_equal(tri48, ref48), "3d-path mismatch vs torch-semantics reference"

    print("KERNEL_OK")
</pallas_src>

<mosaic_0001>
module attributes {stable_mosaic.version = 11 : i64} {
  func.func @_triangle_flat_kernel(%arg0: i32, %arg1: memref<32x1024xbf16, #tpu.memory_space<vmem>>, %arg2: memref<32x1024xbf16, #tpu.memory_space<vmem>>, %arg3: memref<32x32xi8, #tpu.memory_space<vmem>>, %arg4: memref<32x32xi8, #tpu.memory_space<vmem>>, %arg5: memref<32x1024xi8, #tpu.memory_space<vmem>>) attributes {dimension_semantics = [#tpu.dimension_semantics<arbitrary>], iteration_bounds = array<i64: 1>, scalar_prefetch = 0 : i64, scratch_operands = 0 : i64, tpu.core_type = #tpu.core_type<tc>, window_params = [{pipeline_mode = #tpu.pipeline_mode<synchronous>, transform_indices = @transform_0, window_bounds = array<i64: 32, 1024>}, {pipeline_mode = #tpu.pipeline_mode<synchronous>, transform_indices = @transform_1, window_bounds = array<i64: 32, 1024>}, {pipeline_mode = #tpu.pipeline_mode<synchronous>, transform_indices = @transform_2, window_bounds = array<i64: 32, 32>}, {pipeline_mode = #tpu.pipeline_mode<synchronous>, transform_indices = @transform_3, window_bounds = array<i64: 32, 32>}, {pipeline_mode = #tpu.pipeline_mode<synchronous>, transform_indices = @transform_4, window_bounds = array<i64: 32, 1024>}]} {
    %c0 = arith.constant 0 : index
    %c0_0 = arith.constant 0 : index
    %0 = vector.load %arg3[%c0, %c0_0] : memref<32x32xi8, #tpu.memory_space<vmem>>, vector<32x32xi8>
    %c0_i8 = arith.constant 0 : i8
    %1 = vector.broadcast %c0_i8 : i8 to vector<32x32xi8>
    %2 = arith.cmpi ne, %0, %1 : vector<32x32xi8>
    %3 = arith.extui %2 : vector<32x32xi1> to vector<32x32xi32>
    %4 = arith.sitofp %3 : vector<32x32xi32> to vector<32x32xf32>
    %5 = arith.truncf %4 : vector<32x32xf32> to vector<32x32xbf16>
    %c0_1 = arith.constant 0 : index
    %c0_2 = arith.constant 0 : index
    %6 = vector.load %arg4[%c0_1, %c0_2] : memref<32x32xi8, #tpu.memory_space<vmem>>, vector<32x32xi8>
    %c0_i8_3 = arith.constant 0 : i8
    %7 = vector.broadcast %c0_i8_3 : i8 to vector<32x32xi8>
    %8 = arith.cmpi ne, %6, %7 : vector<32x32xi8>
    %9 = arith.extui %8 : vector<32x32xi1> to vector<32x32xi32>
    %10 = arith.sitofp %9 : vector<32x32xi32> to vector<32x32xf32>
    %11 = arith.truncf %10 : vector<32x32xf32> to vector<32x32xbf16>
    %c0_4 = arith.constant 0 : index
    %c0_5 = arith.constant 0 : index
    %12 = vector.load %arg1[%c0_4, %c0_5] : memref<32x1024xbf16, #tpu.memory_space<vmem>>, vector<32x1024xbf16>
    %cst = arith.constant dense<0.000000e+00> : vector<32x1024xf32>
    %13 = tpu.matmul %5, %12, %cst {dimension_numbers = #tpu.dot_dimension_numbers<[1], [0], [0], [1], [0, 0, 1, 1], [], []>} : vector<32x32xbf16>, vector<32x1024xbf16>, vector<32x1024xf32> -> vector<32x1024xf32>
    %c0_6 = arith.constant 0 : index
    %c0_7 = arith.constant 0 : index
    %14 = vector.load %arg2[%c0_6, %c0_7] : memref<32x1024xbf16, #tpu.memory_space<vmem>>, vector<32x1024xbf16>
    %cst_8 = arith.constant dense<0.000000e+00> : vector<32x1024xf32>
    %15 = tpu.matmul %11, %14, %cst_8 {dimension_numbers = #tpu.dot_dimension_numbers<[1], [0], [0], [1], [0, 0, 1, 1], [], []>} : vector<32x32xbf16>, vector<32x1024xbf16>, vector<32x1024xf32> -> vector<32x1024xf32>
    %cst_9 = arith.constant 5.000000e-01 : f32
    %16 = vector.broadcast %cst_9 : f32 to vector<32x1024xf32>
    %17 = arith.cmpf ogt, %13, %16 : vector<32x1024xf32>
    %cst_10 = arith.constant 5.000000e-01 : f32
    %18 = vector.broadcast %cst_10 : f32 to vector<32x1024xf32>
    %19 = arith.cmpf ogt, %15, %18 : vector<32x1024xf32>
    %20 = arith.andi %17, %19 : vector<32x1024xi1>
    %21 = arith.extui %20 : vector<32x1024xi1> to vector<32x1024xi8>
    %c0_11 = arith.constant 0 : index
    %c0_12 = arith.constant 0 : index
    %22 = vector.load %arg5[%c0_11, %c0_12] : memref<32x1024xi8, #tpu.memory_space<vmem>>, vector<32x1024xi8>
    tpu.vector_store %arg5[%c0_11, %c0_12], %21 {strides = array<i32>} : memref<32x1024xi8, #tpu.memory_space<vmem>>, vector<32x1024xi8>,
    return
  }
  func.func @transform_0(%arg0: i32) -> (i32, i32) {
    %c0_i32 = arith.constant 0 : i32
    %c0_i32_0 = arith.constant 0 : i32
    %c0_i32_1 = arith.constant 0 : i32
    return %c0_i32, %c0_i32_0 : i32, i32
  }
  func.func @transform_1(%arg0: i32) -> (i32, i32) {
    %c0_i32 = arith.constant 0 : i32
    %c0_i32_0 = arith.constant 0 : i32
    %c0_i32_1 = arith.constant 0 : i32
    return %c0_i32, %c0_i32_0 : i32, i32
  }
  func.func @transform_2(%arg0: i32) -> (i32, i32) {
    %c0_i32 = arith.constant 0 : i32
    %c0_i32_0 = arith.constant 0 : i32
    %c0_i32_1 = arith.constant 0 : i32
    return %c0_i32, %c0_i32_0 : i32, i32
  }
  func.func @transform_3(%arg0: i32) -> (i32, i32) {
    %c0_i32 = arith.constant 0 : i32
    %c0_i32_0 = arith.constant 0 : i32
    %c0_i32_1 = arith.constant 0 : i32
    return %c0_i32, %c0_i32_0 : i32, i32
  }
  func.func @transform_4(%arg0: i32) -> (i32, i32) {
    %c0_i32 = arith.constant 0 : i32
    %c0_i32_0 = arith.constant 0 : i32
    %c0_i32_1 = arith.constant 0 : i32
    return %c0_i32, %c0_i32_0 : i32, i32
  }
}

</mosaic_0001>

<llo_original>
// kernel: tpu_custom_call.1
$region0: #{tpu_custom_call.1}
  #allocation0 [shape = 'u32[]', space=smem, size = 0x4, offset = 0x4, fixed_abs, tag = 'smem constant byte address 0x4 - core index']
  #allocation1 [shape = 'u32[72,128]{1,0:T(1,128)}', space=vmem, size = 0x9000, scoped, tag = 'internal scratch']
  %s0 = inlined_call_operand.hbm [shape: bf16[32,1024], index: 0, kind: input, shape index: {}]
  %s1 = inlined_call_operand.hbm [shape: bf16[32,1024], index: 1, kind: input, shape index: {}]
  %s2 = inlined_call_operand.hbm [shape: s8[32,32], index: 2, kind: input, shape index: {}]
  %s3 = inlined_call_operand.hbm [shape: s8[32,32], index: 3, kind: input, shape index: {}]
  %s4 = inlined_call_operand.hbm [shape: s8[32,1024], index: 4, kind: output, shape index: {}]
  %s5 = sld [smem:[#allocation0]]
  $region42: #{tpu_custom_call.1} parent=0
    _
  %s7 = ssub.s32 1, %s5
  %s8 = scalar_select 0, %s7, %s5
  $region1: #{tpu_custom_call.1} parent=0
    #allocation2 [shape = 'u8[65536]{0}', space=vmem, size = 0x10000, scoped, tag = 'input window, operand 0, single buffered']
    #allocation3 [shape = 's32[1]{0}', space=sflag, size = 0x4, scoped, tag = 'scoped memory for tpu_custom_call.1']
    #allocation4 [shape = 's32[1]{0}', space=sflag, size = 0x4, scoped, tag = 'scoped memory for tpu_custom_call.1']
    #allocation5 [shape = 'u8[65536]{0}', space=vmem, size = 0x10000, scoped, tag = 'input window, operand 1, single buffered']
    #allocation6 [shape = 's32[1]{0}', space=sflag, size = 0x4, scoped, tag = 'scoped memory for tpu_custom_call.1']
    #allocation7 [shape = 'u8[4096]{0}', space=vmem, size = 0x1000, scoped, tag = 'input window, operand 2, single buffered']
    #allocation8 [shape = 'u8[4096]{0}', space=vmem, size = 0x1000, scoped, tag = 'input window, operand 3, single buffered']
    #allocation9 [shape = 's32[1]{0}', space=sflag, size = 0x4, scoped, tag = 'scoped memory for tpu_custom_call.1']
    #allocation10 [shape = 'u8[32768]{0}', space=vmem, size = 0x8000, scoped, tag = 'output window, operand 0, single buffered']
    %9 = vsyncpa [#allocation3], 0
    %10 = vsyncpa [#allocation6], 0
    %11 = vsyncpa [#allocation9], 0
    %12 = vsyncpa [#allocation4], 0
    // Predicated region
    $region2: #{tpu_custom_call.1} parent=1 // pred_check
      _
    $region3: #{tpu_custom_call.1} parent=1 // pred_check_branch
      %14 = sbr.rel (0) target = $region5
    $region4: #{tpu_custom_call.1} parent=1 // pred_region
      %16 = vsyncadd [#allocation3], 0
      %s17 = sshll.u32 %s0, 4
      %s18 = int_to_ptr.hbm [resolvable:$true] %s17
      %s19 = sshll.u32 [#allocation2], 4
      %s20 = int_to_ptr.vmem [resolvable:$true] %s19
      %25 = dma.hbm_to_vmem [thread:$0]  %s18, 2048, %s20, [#allocation3], 512, 512, 32
    $region5: #{tpu_custom_call.1} parent=1 // pred_fallthru
      _
    // Predicated region
    $region6: #{tpu_custom_call.1} parent=1 // pred_check
      _
    $region7: #{tpu_custom_call.1} parent=1 // pred_check_branch
      %27 = sbr.rel (0) target = $region9
    $region8: #{tpu_custom_call.1} parent=1 // pred_region
      %29 = vsyncadd [#allocation6], 0
      %s30 = sshll.u32 %s1, 4
      %s31 = int_to_ptr.hbm [resolvable:$true] %s30
      %s32 = sshll.u32 [#allocation5], 4
      %s33 = int_to_ptr.vmem [resolvable:$true] %s32
      %38 = dma.hbm_to_vmem [thread:$0]  %s31, 2048, %s33, [#allocation6], 512, 512, 32
    $region9: #{tpu_custom_call.1} parent=1 // pred_fallthru
      _
    // Predicated region
    $region10: #{tpu_custom_call.1} parent=1 // pred_check
      _
    $region11: #{tpu_custom_call.1} parent=1 // pred_check_branch
      %40 = sbr.rel (0) target = $region13
    $region12: #{tpu_custom_call.1} parent=1 // pred_region
      %42 = vsyncadd [#allocation6], 0
      %s44 = sshll.u32 %s2, 4
      %s45 = int_to_ptr.hbm [resolvable:$true] %s44
      %s46 = sshll.u32 [#allocation7], 4
      %s47 = int_to_ptr.vmem [resolvable:$true] %s46
      %49 = dma.hbm_to_vmem [thread:$0]  %s45, 128, %s47, [#allocation6]
    $region13: #{tpu_custom_call.1} parent=1 // pred_fallthru
      _
    // Predicated region
    $region14: #{tpu_custom_call.1} parent=1 // pred_check
      _
    $region15: #{tpu_custom_call.1} parent=1 // pred_check_branch
      %51 = sbr.rel (0) target = $region17
    $region16: #{tpu_custom_call.1} parent=1 // pred_region
      %53 = vsyncadd [#allocation9], 0
      %s55 = sshll.u32 %s3, 4
      %s56 = int_to_ptr.hbm [resolvable:$true] %s55
      %s57 = sshll.u32 [#allocation8], 4
      %s58 = int_to_ptr.vmem [resolvable:$true] %s57
      %60 = dma.hbm_to_vmem [thread:$0]  %s56, 128, %s58, [#allocation9]
    $region17: #{tpu_custom_call.1} parent=1 // pred_fallthru
      _
    // Predicated region
    $region18: #{tpu_custom_call.1} parent=1 // pred_check
      _
    $region19: #{tpu_custom_call.1} parent=1 // pred_check_branch
      %62 = sbr.rel (0) target = $region21
    $region20: #{tpu_custom_call.1} parent=1 // pred_region
      %64 = dma.done [#allocation3], 2048
    $region21: #{tpu_custom_call.1} parent=1 // pred_fallthru
      _
    // Predicated region
    $region22: #{tpu_custom_call.1} parent=1 // pred_check
      _
    $region23: #{tpu_custom_call.1} parent=1 // pred_check_branch
      %66 = sbr.rel (0) target = $region25
    $region24: #{tpu_custom_call.1} parent=1 // pred_region
      %68 = dma.done [#allocation6], 2048
    $region25: #{tpu_custom_call.1} parent=1 // pred_fallthru
      _
    // Predicated region
    $region26: #{tpu_custom_call.1} parent=1 // pred_check
      _
    $region27: #{tpu_custom_call.1} parent=1 // pred_check_branch
      %70 = sbr.rel (0) target = $region29
    $region28: #{tpu_custom_call.1} parent=1 // pred_region
      %72 = dma.done [#allocation6], 128
    $region29: #{tpu_custom_call.1} parent=1 // pred_fallthru
      _
    // Predicated region
    $region30: #{tpu_custom_call.1} parent=1 // pred_check
      _
    $region31: #{tpu_custom_call.1} parent=1 // pred_check_branch
      %74 = sbr.rel (0) target = $region33
    $region32: #{tpu_custom_call.1} parent=1 // pred_region
      %76 = dma.done [#allocation9], 128
    $region33: #{tpu_custom_call.1} parent=1 // pred_fallthru
      _
    %v80 = vld [vmem:[#allocation7] sm:$0xff]
    %vm81 = vnez %v80
    %v82 = vsel %vm81, 16843009, 0
    %v83 = vunpack.c.0.s8 %v82
    %v84 = vunpack.c.1.s8 %v82
    %v85 = vunpack.c.2.s8 %v82
    %v86 = vunpack.c.3.s8 %v82
    %v87 = vpack.c.b16 %v83, %v83
    %v88 = vpack.c.b8 %v87, %v87
    %v89 = vpack.c.b16 %v84, %v84
    %v90 = vpack.c.b8 %v89, %v89
    %v91 = vpack.c.b16 %v85, %v85
    %v92 = vpack.c.b8 %v91, %v91
    %v93 = vpack.c.b16 %v86, %v86
    %v94 = vpack.c.b8 %v93, %v93
    %vm95 = vnez %v88
    %vm96 = vnez %v90
    %vm97 = vnez %v92
    %vm98 = vnez %v94
    %v99 = vsel %vm95, 16843009, 0
    %v100 = vsel %vm96, 16843009, 0
    %v101 = vsel %vm97, 16843009, 0
    %v102 = vsel %vm98, 16843009, 0
    %v103 = vunpack.c.0.s8 %v99
    %v104 = vunpack.c.0.s8 %v100
    %v105 = vunpack.c.0.s8 %v101
    %v106 = vunpack.c.0.s8 %v102
    %vm107 = vcmp.ne.s32.totalorder %v103, 0
    %vm108 = vcmp.ne.s32.totalorder %v104, 0
    %vm109 = vcmp.ne.s32.totalorder %v105, 0
    %vm110 = vcmp.ne.s32.totalorder %v106, 0
    %v111 = vsel %vm107, 1, 0
    %v112 = vsel %vm108, 1, 0
    %v113 = vsel %vm109, 1, 0
    %v114 = vsel %vm110, 1, 0
    %v115 = vcvt.s32.f32 %v111
    %v116 = vcvt.s32.f32 %v112
    %v117 = vcvt.s32.f32 %v113
    %v118 = vcvt.s32.f32 %v114
    %v119 = vpack.c.bf16 %v116, %v115
    %v120 = vpack.c.bf16 %v118, %v117
    %v121 = vld [vmem:[#allocation8] sm:$0xff]
    %vm122 = vnez %v121
    %v123 = vsel %vm122, 16843009, 0
    %v124 = vunpack.c.0.s8 %v123
    %v125 = vunpack.c.1.s8 %v123
    %v126 = vunpack.c.2.s8 %v123
    %v127 = vunpack.c.3.s8 %v123
    %v128 = vpack.c.b16 %v124, %v124
    %v129 = vpack.c.b8 %v128, %v128
    %v130 = vpack.c.b16 %v125, %v125
    %v131 = vpack.c.b8 %v130, %v130
    %v132 = vpack.c.b16 %v126, %v126
    %v133 = vpack.c.b8 %v132, %v132
    %v134 = vpack.c.b16 %v127, %v127
    %v135 = vpack.c.b8 %v134, %v134
    %vm136 = vnez %v129
    %vm137 = vnez %v131
    %vm138 = vnez %v133
    %vm139 = vnez %v135
    %v140 = vsel %vm136, 16843009, 0
    %v141 = vsel %vm137, 16843009, 0
    %v142 = vsel %vm138, 16843009, 0
    %v143 = vsel %vm139, 16843009, 0
    %v144 = vunpack.c.0.s8 %v140
    %v145 = vunpack.c.0.s8 %v141
    %v146 = vunpack.c.0.s8 %v142
    %v147 = vunpack.c.0.s8 %v143
    %vm148 = vcmp.ne.s32.totalorder %v144, 0
    %vm149 = vcmp.ne.s32.totalorder %v145, 0
    %vm150 = vcmp.ne.s32.totalorder %v146, 0
    %vm151 = vcmp.ne.s32.totalorder %v147, 0
    %v152 = vsel %vm148, 1, 0
    %v153 = vsel %vm149, 1, 0
    %v154 = vsel %vm150, 1, 0
    %v155 = vsel %vm151, 1, 0
    %v156 = vcvt.s32.f32 %v152
    %v157 = vcvt.s32.f32 %v153
    %v158 = vcvt.s32.f32 %v154
    %v159 = vcvt.s32.f32 %v155
    %v160 = vpack.c.bf16 %v157, %v156
    %v161 = vpack.c.bf16 %v159, %v158
    %v162 = vld [vmem:[#allocation2] sm:$0xff]
    %v163 = vld [vmem:[#allocation2 + $0x8] sm:$0xff]
    %v164 = vld [vmem:[#allocation2 + $0x10] sm:$0xff]
    %v165 = vld [vmem:[#allocation2 + $0x18] sm:$0xff]
    %v166 = vld [vmem:[#allocation2 + $0x20] sm:$0xff]
    %v167 = vld [vmem:[#allocation2 + $0x28] sm:$0xff]
    %v168 = vld [vmem:[#allocation2 + $0x30] sm:$0xff]
    %v169 = vld [vmem:[#allocation2 + $0x38] sm:$0xff]
    %v170 = vld [vmem:[#allocation2 + $0x40] sm:$0xff]
    %v171 = vld [vmem:[#allocation2 + $0x48] sm:$0xff]
    %v172 = vld [vmem:[#allocation2 + $0x50] sm:$0xff]
    %v173 = vld [vmem:[#allocation2 + $0x58] sm:$0xff]
    %v174 = vld [vmem:[#allocation2 + $0x60] sm:$0xff]
    %v175 = vld [vmem:[#allocation2 + $0x68] sm:$0xff]
    %v176 = vld [vmem:[#allocation2 + $0x70] sm:$0xff]
    %v177 = vld [vmem:[#allocation2 + $0x78] sm:$0xff]
    %v194 = vunpack.c.l.b16 %v162
    %v195 = vunpack.c.h.b16 %v162
    %v196 = vunpack.c.l.b16 %v163
    %v197 = vunpack.c.h.b16 %v163
    %v198 = vunpack.c.l.b16 %v164
    %v199 = vunpack.c.h.b16 %v164
    %v200 = vunpack.c.l.b16 %v165
    %v201 = vunpack.c.h.b16 %v165
    %v202 = vunpack.c.l.b16 %v166
    %v203 = vunpack.c.h.b16 %v166
    %v204 = vunpack.c.l.b16 %v167
    %v205 = vunpack.c.h.b16 %v167
    %v206 = vunpack.c.l.b16 %v168
    %v207 = vunpack.c.h.b16 %v168
    %v208 = vunpack.c.l.b16 %v169
    %v209 = vunpack.c.h.b16 %v169
    %v210 = vunpack.c.l.b16 %v170
    %v211 = vunpack.c.h.b16 %v170
    %v212 = vunpack.c.l.b16 %v171
    %v213 = vunpack.c.h.b16 %v171
    %v214 = vunpack.c.l.b16 %v172
    %v215 = vunpack.c.h.b16 %v172
    %v216 = vunpack.c.l.b16 %v173
    %v217 = vunpack.c.h.b16 %v173
    %v218 = vunpack.c.l.b16 %v174
    %v219 = vunpack.c.h.b16 %v174
    %v220 = vunpack.c.l.b16 %v175
    %v221 = vunpack.c.h.b16 %v175
    %v222 = vunpack.c.l.b16 %v176
    %v223 = vunpack.c.h.b16 %v176
    %v224 = vunpack.c.l.b16 %v177
    %v225 = vunpack.c.h.b16 %v177
    %v226 = vpack.c.b16 %v202, %v194
    %v227 = vpack.c.b16 %v203, %v195
    %v228 = vpack.c.b16 %v204, %v196
    %v229 = vpack.c.b16 %v205, %v197
    %v230 = vpack.c.b16 %v206, %v198
    %v231 = vpack.c.b16 %v207, %v199
    %v232 = vpack.c.b16 %v208, %v200
    %v233 = vpack.c.b16 %v209, %v201
    %v234 = vpack.c.b16 %v218, %v210
    %v235 = vpack.c.b16 %v219, %v211
    %v236 = vpack.c.b16 %v220, %v212
    %v237 = vpack.c.b16 %v221, %v213
    %v238 = vpack.c.b16 %v222, %v214
    %v239 = vpack.c.b16 %v223, %v215
    %v240 = vpack.c.b16 %v224, %v216
    %v241 = vpack.c.b16 %v225, %v217
    %vm258 = vcmask 261120
    %v260 = vsel %vm258, %v119, 0
    %v263 = vsel %vm258, %v120, 0
    %265 = vmatpush.bf16.msra.mxu0 0
    %266 = vmatpush.bf16.msra.mxu0 0
    %267 = vmatpush.bf16.msra.mxu0 0
    %268 = vmatpush.bf16.msra.mxu0 0
    %269 = vmatpush.bf16.msra.mxu0 0
    %270 = vmatpush.bf16.msra.mxu0 0
    %271 = vmatpush.bf16.msra.mxu0 %v234
    %272 = vmatpush.bf16.msra.mxu0 %v226
    %273 = vmatmul.bf16.gmra.mxu0 %v260
    %v274 = vpop.f32.mrf.mxu0
    %v275 = vadd.f32 0.0, %v274
    %v276 = vpop.f32.mrf.mxu0
    %v277 = vadd.f32 0.0, %v276
    %278 = vmatmul.bf16.gmra.mxu0 %v263
    %v279 = vpop.f32.mrf.mxu0
    %v280 = vadd.f32 0.0, %v279
    %v281 = vpop.f32.mrf.mxu0
    %v282 = vadd.f32 0.0, %v281
    %283 = vdwg.mxu0
    %284 = vmatpush.bf16.msra.mxu0 0
    %285 = vmatpush.bf16.msra.mxu0 0
    %286 = vmatpush.bf16.msra.mxu0 0
    %287 = vmatpush.bf16.msra.mxu0 0
    %288 = vmatpush.bf16.msra.mxu0 0
    %289 = vmatpush.bf16.msra.mxu0 0
    %290 = vmatpush.bf16.msra.mxu0 %v235
    %291 = vmatpush.bf16.msra.mxu0 %v227
    %292 = vmatmul.bf16.gmra.mxu0 %v260
    %v293 = vpop.f32.mrf.mxu0
    %v294 = vadd.f32 0.0, %v293
    %v295 = vpop.f32.mrf.mxu0
    %v296 = vadd.f32 0.0, %v295
    %297 = vmatmul.bf16.gmra.mxu0 %v263
    %v298 = vpop.f32.mrf.mxu0
    %v299 = vadd.f32 0.0, %v298
    %v300 = vpop.f32.mrf.mxu0
    %v301 = vadd.f32 0.0, %v300
    %302 = vdwg.mxu0
    %303 = vmatpush.bf16.msra.mxu0 0
    %304 = vmatpush.bf16.msra.mxu0 0
    %305 = vmatpush.bf16.msra.mxu0 0
    %306 = vmatpush.bf16.msra.mxu0 0
    %307 = vmatpush.bf16.msra.mxu0 0
    %308 = vmatpush.bf16.msra.mxu0 0
    %309 = vmatpush.bf16.msra.mxu0 %v236
    %310 = vmatpush.bf16.msra.mxu0 %v228
    %311 = vmatmul.bf16.gmra.mxu0 %v260
    %v312 = vpop.f32.mrf.mxu0
    %v313 = vadd.f32 0.0, %v312
    %v314 = vpop.f32.mrf.mxu0
    %v315 = vadd.f32 0.0, %v314
    %316 = vmatmul.bf16.gmra.mxu0 %v263
    %v317 = vpop.f32.mrf.mxu0
    %v318 = vadd.f32 0.0, %v317
    %v319 = vpop.f32.mrf.mxu0
    %v320 = vadd.f32 0.0, %v319
    %321 = vdwg.mxu0
    %322 = vmatpush.bf16.msra.mxu0 0
    %323 = vmatpush.bf16.msra.mxu0 0
    %324 = vmatpush.bf16.msra.mxu0 0
    %325 = vmatpush.bf16.msra.mxu0 0
    %326 = vmatpush.bf16.msra.mxu0 0
    %327 = vmatpush.bf16.msra.mxu0 0
    %328 = vmatpush.bf16.msra.mxu0 %v237
    %329 = vmatpush.bf16.msra.mxu0 %v229
    %330 = vmatmul.bf16.gmra.mxu0 %v260
    %v331 = vpop.f32.mrf.mxu0
    %v332 = vadd.f32 0.0, %v331
    %v333 = vpop.f32.mrf.mxu0
    %v334 = vadd.f32 0.0, %v333
    %335 = vmatmul.bf16.gmra.mxu0 %v263
    %v336 = vpop.f32.mrf.mxu0
    %v337 = vadd.f32 0.0, %v336
    %v338 = vpop.f32.mrf.mxu0
    %v339 = vadd.f32 0.0, %v338
    %340 = vdwg.mxu0
    %341 = vmatpush.bf16.msra.mxu0 0
    %342 = vmatpush.bf16.msra.mxu0 0
    %343 = vmatpush.bf16.msra.mxu0 0
    %344 = vmatpush.bf16.msra.mxu0 0
    %345 = vmatpush.bf16.msra.mxu0 0
    %346 = vmatpush.bf16.msra.mxu0 0
    %347 = vmatpush.bf16.msra.mxu0 %v238
    %348 = vmatpush.bf16.msra.mxu0 %v230
    %349 = vmatmul.bf16.gmra.mxu0 %v260
    %v350 = vpop.f32.mrf.mxu0
    %v351 = vadd.f32 0.0, %v350
    %v352 = vpop.f32.mrf.mxu0
    %v353 = vadd.f32 0.0, %v352
    %354 = vmatmul.bf16.gmra.mxu0 %v263
    %v355 = vpop.f32.mrf.mxu0
    %v356 = vadd.f32 0.0, %v355
    %v357 = vpop.f32.mrf.mxu0
    %v358 = vadd.f32 0.0, %v357
    %359 = vdwg.mxu0
    %360 = vmatpush.bf16.msra.mxu0 0
    %361 = vmatpush.bf16.msra.mxu0 0
    %362 = vmatpush.bf16.msra.mxu0 0
    %363 = vmatpush.bf16.msra.mxu0 0
    %364 = vmatpush.bf16.msra.mxu0 0
    %365 = vmatpush.bf16.msra.mxu0 0
    %366 = vmatpush.bf16.msra.mxu0 %v239
    %367 = vmatpush.bf16.msra.mxu0 %v231
    %368 = vmatmul.bf16.gmra.mxu0 %v260
    %v369 = vpop.f32.mrf.mxu0
    %v370 = vadd.f32 0.0, %v369
    %v371 = vpop.f32.mrf.mxu0
    %v372 = vadd.f32 0.0, %v371
    %373 = vmatmul.bf16.gmra.mxu0 %v263
    %v374 = vpop.f32.mrf.mxu0
    %v375 = vadd.f32 0.0, %v374
    %v376 = vpop.f32.mrf.mxu0
    %v377 = vadd.f32 0.0, %v376
    %378 = vdwg.mxu0
    %379 = vmatpush.bf16.msra.mxu0 0
    %380 = vmatpush.bf16.msra.mxu0 0
    %381 = vmatpush.bf16.msra.mxu0 0
    %382 = vmatpush.bf16.msra.mxu0 0
    %383 = vmatpush.bf16.msra.mxu0 0
    %384 = vmatpush.bf16.msra.mxu0 0
    %385 = vmatpush.bf16.msra.mxu0 %v240
    %386 = vmatpush.bf16.msra.mxu0 %v232
    %387 = vmatmul.bf16.gmra.mxu0 %v260
    %v388 = vpop.f32.mrf.mxu0
    %v389 = vadd.f32 0.0, %v388
    %v390 = vpop.f32.mrf.mxu0
    %v391 = vadd.f32 0.0, %v390
    %392 = vmatmul.bf16.gmra.mxu0 %v263
    %v393 = vpop.f32.mrf.mxu0
    %v394 = vadd.f32 0.0, %v393
    %v395 = vpop.f32.mrf.mxu0
    %v396 = vadd.f32 0.0, %v395
    %397 = vdwg.mxu0
    %398 = vmatpush.bf16.msra.mxu0 0
    %399 = vmatpush.bf16.msra.mxu0 0
    %400 = vmatpush.bf16.msra.mxu0 0
    %401 = vmatpush.bf16.msra.mxu0 0
    %402 = vmatpush.bf16.msra.mxu0 0
    %403 = vmatpush.bf16.msra.mxu0 0
    %404 = vmatpush.bf16.msra.mxu0 %v241
    %405 = vmatpush.bf16.msra.mxu0 %v233
    %406 = vmatmul.bf16.gmra.mxu0 %v260
    %v407 = vpop.f32.mrf.mxu0
    %v408 = vadd.f32 0.0, %v407
    %v409 = vpop.f32.mrf.mxu0
    %v410 = vadd.f32 0.0, %v409
    %411 = vmatmul.bf16.gmra.mxu0 %v263
    %v412 = vpop.f32.mrf.mxu0
    %v413 = vadd.f32 0.0, %v412
    %v414 = vpop.f32.mrf.mxu0
    %v415 = vadd.f32 0.0, %v414
    %416 = vdwg.mxu0
    %v417 = vld [vmem:[#allocation5] sm:$0xff]
    %v418 = vld [vmem:[#allocation5 + $0x8] sm:$0xff]
    %v419 = vld [vmem:[#allocation5 + $0x10] sm:$0xff]
    %v420 = vld [vmem:[#allocation5 + $0x18] sm:$0xff]
    %v421 = vld [vmem:[#allocation5 + $0x20] sm:$0xff]
    %v422 = vld [vmem:[#allocation5 + $0x28] sm:$0xff]
    %v423 = vld [vmem:[#allocation5 + $0x30] sm:$0xff]
    %v424 = vld [vmem:[#allocation5 + $0x38] sm:$0xff]
    %v425 = vld [vmem:[#allocation5 + $0x40] sm:$0xff]
    %v426 = vld [vmem:[#allocation5 + $0x48] sm:$0xff]
    %v427 = vld [vmem:[#allocation5 + $0x50] sm:$0xff]
    %v428 = vld [vmem:[#allocation5 + $0x58] sm:$0xff]
    %v429 = vld [vmem:[#allocation5 + $0x60] sm:$0xff]
    %v430 = vld [vmem:[#allocation5 + $0x68] sm:$0xff]
    %v431 = vld [vmem:[#allocation5 + $0x70] sm:$0xff]
    %v432 = vld [vmem:[#allocation5 + $0x78] sm:$0xff]
    %v449 = vunpack.c.l.b16 %v417
    %v450 = vunpack.c.h.b16 %v417
    %v451 = vunpack.c.l.b16 %v418
    %v452 = vunpack.c.h.b16 %v418
    %v453 = vunpack.c.l.b16 %v419
    %v454 = vunpack.c.h.b16 %v419
    %v455 = vunpack.c.l.b16 %v420
    %v456 = vunpack.c.h.b16 %v420
    %v457 = vunpack.c.l.b16 %v421
    %v458 = vunpack.c.h.b16 %v421
    %v459 = vunpack.c.l.b16 %v422
    %v460 = vunpack.c.h.b16 %v422
    %v461 = vunpack.c.l.b16 %v423
    %v462 = vunpack.c.h.b16 %v423
    %v463 = vunpack.c.l.b16 %v424
    %v464 = vunpack.c.h.b16 %v424
    %v465 = vunpack.c.l.b16 %v425
    %v466 = vunpack.c.h.b16 %v425
    %v467 = vunpack.c.l.b16 %v426
    %v468 = vunpack.c.h.b16 %v426
    %v469 = vunpack.c.l.b16 %v427
    %v470 = vunpack.c.h.b16 %v427
    %v471 = vunpack.c.l.b16 %v428
    %v472 = vunpack.c.h.b16 %v428
    %v473 = vunpack.c.l.b16 %v429
    %v474 = vunpack.c.h.b16 %v429
    %v475 = vunpack.c.l.b16 %v430
    %v476 = vunpack.c.h.b16 %v430
    %v477 = vunpack.c.l.b16 %v431
    %v478 = vunpack.c.h.b16 %v431
    %v479 = vunpack.c.l.b16 %v432
    %v480 = vunpack.c.h.b16 %v432
    %v481 = vpack.c.b16 %v457, %v449
    %v482 = vpack.c.b16 %v458, %v450
    %v483 = vpack.c.b16 %v459, %v451
    %v484 = vpack.c.b16 %v460, %v452
    %v485 = vpack.c.b16 %v461, %v453
    %v486 = vpack.c.b16 %v462, %v454
    %v487 = vpack.c.b16 %v463, %v455
    %v488 = vpack.c.b16 %v464, %v456
    %v489 = vpack.c.b16 %v473, %v465
    %v490 = vpack.c.b16 %v474, %v466
    %v491 = vpack.c.b16 %v475, %v467
    %v492 = vpack.c.b16 %v476, %v468
    %v493 = vpack.c.b16 %v477, %v469
    %v494 = vpack.c.b16 %v478, %v470
    %v495 = vpack.c.b16 %v479, %v471
    %v496 = vpack.c.b16 %v480, %v472
    %v514 = vsel %vm258, %v160, 0
    %v517 = vsel %vm258, %v161, 0
    %519 = vmatpush.bf16.msra.mxu0 0
    %520 = vmatpush.bf16.msra.mxu0 0
    %521 = vmatpush.bf16.msra.mxu0 0
    %522 = vmatpush.bf16.msra.mxu0 0
    %523 = vmatpush.bf16.msra.mxu0 0
    %524 = vmatpush.bf16.msra.mxu0 0
    %525 = vmatpush.bf16.msra.mxu0 %v489
    %526 = vmatpush.bf16.msra.mxu0 %v481
    %527 = vmatmul.bf16.gmra.mxu0 %v514
    %v528 = vpop.f32.mrf.mxu0
    %v529 = vadd.f32 0.0, %v528
    %v530 = vpop.f32.mrf.mxu0
    %v531 = vadd.f32 0.0, %v530
    %532 = vmatmul.bf16.gmra.mxu0 %v517
    %v533 = vpop.f32.mrf.mxu0
    %v534 = vadd.f32 0.0, %v533
    %v535 = vpop.f32.mrf.mxu0
    %v536 = vadd.f32 0.0, %v535
    %537 = vdwg.mxu0
    %538 = vmatpush.bf16.msra.mxu0 0
    %539 = vmatpush.bf16.msra.mxu0 0
    %540 = vmatpush.bf16.msra.mxu0 0
    %541 = vmatpush.bf16.msra.mxu0 0
    %542 = vmatpush.bf16.msra.mxu0 0
    %543 = vmatpush.bf16.msra.mxu0 0
    %544 = vmatpush.bf16.msra.mxu0 %v490
    %545 = vmatpush.bf16.msra.mxu0 %v482
    %546 = vmatmul.bf16.gmra.mxu0 %v514
    %v547 = vpop.f32.mrf.mxu0
    %v548 = vadd.f32 0.0, %v547
    %v549 = vpop.f32.mrf.mxu0
    %v550 = vadd.f32 0.0, %v549
    %551 = vmatmul.bf16.gmra.mxu0 %v517
    %v552 = vpop.f32.mrf.mxu0
    %v553 = vadd.f32 0.0, %v552
    %v554 = vpop.f32.mrf.mxu0
    %v555 = vadd.f32 0.0, %v554
    %556 = vdwg.mxu0
    %557 = vmatpush.bf16.msra.mxu0 0
    %558 = vmatpush.bf16.msra.mxu0 0
    %559 = vmatpush.bf16.msra.mxu0 0
    %560 = vmatpush.bf16.msra.mxu0 0
    %561 = vmatpush.bf16.msra.mxu0 0
    %562 = vmatpush.bf16.msra.mxu0 0
    %563 = vmatpush.bf16.msra.mxu0 %v491
    %564 = vmatpush.bf16.msra.mxu0 %v483
    %565 = vmatmul.bf16.gmra.mxu0 %v514
    %v566 = vpop.f32.mrf.mxu0
    %v567 = vadd.f32 0.0, %v566
    %v568 = vpop.f32.mrf.mxu0
    %v569 = vadd.f32 0.0, %v568
    %570 = vmatmul.bf16.gmra.mxu0 %v517
    %v571 = vpop.f32.mrf.mxu0
    %v572 = vadd.f32 0.0, %v571
    %v573 = vpop.f32.mrf.mxu0
    %v574 = vadd.f32 0.0, %v573
    %575 = vdwg.mxu0
    %576 = vmatpush.bf16.msra.mxu0 0
    %577 = vmatpush.bf16.msra.mxu0 0
    %578 = vmatpush.bf16.msra.mxu0 0
    %579 = vmatpush.bf16.msra.mxu0 0
    %580 = vmatpush.bf16.msra.mxu0 0
    %581 = vmatpush.bf16.msra.mxu0 0
    %582 = vmatpush.bf16.msra.mxu0 %v492
    %583 = vmatpush.bf16.msra.mxu0 %v484
    %584 = vmatmul.bf16.gmra.mxu0 %v514
    %v585 = vpop.f32.mrf.mxu0
    %v586 = vadd.f32 0.0, %v585
    %v587 = vpop.f32.mrf.mxu0
    %v588 = vadd.f32 0.0, %v587
    %589 = vmatmul.bf16.gmra.mxu0 %v517
    %v590 = vpop.f32.mrf.mxu0
    %v591 = vadd.f32 0.0, %v590
    %v592 = vpop.f32.mrf.mxu0
    %v593 = vadd.f32 0.0, %v592
    %594 = vdwg.mxu0
    %595 = vmatpush.bf16.msra.mxu0 0
    %596 = vmatpush.bf16.msra.mxu0 0
    %597 = vmatpush.bf16.msra.mxu0 0
    %598 = vmatpush.bf16.msra.mxu0 0
    %599 = vmatpush.bf16.msra.mxu0 0
    %600 = vmatpush.bf16.msra.mxu0 0
    %601 = vmatpush.bf16.msra.mxu0 %v493
    %602 = vmatpush.bf16.msra.mxu0 %v485
    %603 = vmatmul.bf16.gmra.mxu0 %v514
    %v604 = vpop.f32.mrf.mxu0
    %v605 = vadd.f32 0.0, %v604
    %v606 = vpop.f32.mrf.mxu0
    %v607 = vadd.f32 0.0, %v606
    %608 = vmatmul.bf16.gmra.mxu0 %v517
    %v609 = vpop.f32.mrf.mxu0
    %v610 = vadd.f32 0.0, %v609
    %v611 = vpop.f32.mrf.mxu0
    %v612 = vadd.f32 0.0, %v611
    %613 = vdwg.mxu0
    %614 = vmatpush.bf16.msra.mxu0 0
    %615 = vmatpush.bf16.msra.mxu0 0
    %616 = vmatpush.bf16.msra.mxu0 0
    %617 = vmatpush.bf16.msra.mxu0 0
    %618 = vmatpush.bf16.msra.mxu0 0
    %619 = vmatpush.bf16.msra.mxu0 0
    %620 = vmatpush.bf16.msra.mxu0 %v494
    %621 = vmatpush.bf16.msra.mxu0 %v486
    %622 = vmatmul.bf16.gmra.mxu0 %v514
    %v623 = vpop.f32.mrf.mxu0
    %v624 = vadd.f32 0.0, %v623
    %v625 = vpop.f32.mrf.mxu0
    %v626 = vadd.f32 0.0, %v625
    %627 = vmatmul.bf16.gmra.mxu0 %v517
    %v628 = vpop.f32.mrf.mxu0
    %v629 = vadd.f32 0.0, %v628
    %v630 = vpop.f32.mrf.mxu0
    %v631 = vadd.f32 0.0, %v630
    %632 = vdwg.mxu0
    %633 = vmatpush.bf16.msra.mxu0 0
    %634 = vmatpush.bf16.msra.mxu0 0
    %635 = vmatpush.bf16.msra.mxu0 0
    %636 = vmatpush.bf16.msra.mxu0 0
    %637 = vmatpush.bf16.msra.mxu0 0
    %638 = vmatpush.bf16.msra.mxu0 0
    %639 = vmatpush.bf16.msra.mxu0 %v495
    %640 = vmatpush.bf16.msra.mxu0 %v487
    %641 = vmatmul.bf16.gmra.mxu0 %v514
    %v642 = vpop.f32.mrf.mxu0
    %v643 = vadd.f32 0.0, %v642
    %v644 = vpop.f32.mrf.mxu0
    %v645 = vadd.f32 0.0, %v644
    %646 = vmatmul.bf16.gmra.mxu0 %v517
    %v647 = vpop.f32.mrf.mxu0
    %v648 = vadd.f32 0.0, %v647
    %v649 = vpop.f32.mrf.mxu0
    %v650 = vadd.f32 0.0, %v649
    %651 = vdwg.mxu0
    %652 = vmatpush.bf16.msra.mxu0 0
    %653 = vmatpush.bf16.msra.mxu0 0
    %654 = vmatpush.bf16.msra.mxu0 0
    %655 = vmatpush.bf16.msra.mxu0 0
    %656 = vmatpush.bf16.msra.mxu0 0
    %657 = vmatpush.bf16.msra.mxu0 0
    %658 = vmatpush.bf16.msra.mxu0 %v496
    %659 = vmatpush.bf16.msra.mxu0 %v488
    %660 = vmatmul.bf16.gmra.mxu0 %v514
    %v661 = vpop.f32.mrf.mxu0
    %v662 = vadd.f32 0.0, %v661
    %v663 = vpop.f32.mrf.mxu0
    %v664 = vadd.f32 0.0, %v663
    %665 = vmatmul.bf16.gmra.mxu0 %v517
    %v666 = vpop.f32.mrf.mxu0
    %v667 = vadd.f32 0.0, %v666
    %v668 = vpop.f32.mrf.mxu0
    %v669 = vadd.f32 0.0, %v668
    %670 = vdwg.mxu0
    %vm671 = vcmp.gt.f32.partialorder %v275, 0.5
    %vm672 = vcmp.gt.f32.partialorder %v294, 0.5
    %vm673 = vcmp.gt.f32.partialorder %v313, 0.5
    %vm674 = vcmp.gt.f32.partialorder %v332, 0.5
    %vm675 = vcmp.gt.f32.partialorder %v351, 0.5
    %vm676 = vcmp.gt.f32.partialorder %v370, 0.5
    %vm677 = vcmp.gt.f32.partialorder %v389, 0.5
    %vm678 = vcmp.gt.f32.partialorder %v408, 0.5
    %vm679 = vcmp.gt.f32.partialorder %v277, 0.5
    %vm680 = vcmp.gt.f32.partialorder %v296, 0.5
    %vm681 = vcmp.gt.f32.partialorder %v315, 0.5
    %vm682 = vcmp.gt.f32.partialorder %v334, 0.5
    %vm683 = vcmp.gt.f32.partialorder %v353, 0.5
    %vm684 = vcmp.gt.f32.partialorder %v372, 0.5
    %vm685 = vcmp.gt.f32.partialorder %v391, 0.5
    %vm686 = vcmp.gt.f32.partialorder %v410, 0.5
    %vm687 = vcmp.gt.f32.partialorder %v280, 0.5
    %vm688 = vcmp.gt.f32.partialorder %v299, 0.5
    %vm689 = vcmp.gt.f32.partialorder %v318, 0.5
    %vm690 = vcmp.gt.f32.partialorder %v337, 0.5
    %vm691 = vcmp.gt.f32.partialorder %v356, 0.5
    %vm692 = vcmp.gt.f32.partialorder %v375, 0.5
    %vm693 = vcmp.gt.f32.partialorder %v394, 0.5
    %vm694 = vcmp.gt.f32.partialorder %v413, 0.5
    %vm695 = vcmp.gt.f32.partialorder %v282, 0.5
    %vm696 = vcmp.gt.f32.partialorder %v301, 0.5
    %vm697 = vcmp.gt.f32.partialorder %v320, 0.5
    %vm698 = vcmp.gt.f32.partialorder %v339, 0.5
    %vm699 = vcmp.gt.f32.partialorder %v358, 0.5
    %vm700 = vcmp.gt.f32.partialorder %v377, 0.5
    %vm701 = vcmp.gt.f32.partialorder %v396, 0.5
    %vm702 = vcmp.gt.f32.partialorder %v415, 0.5
    %vm703 = vcmp.gt.f32.partialorder %v529, 0.5
    %vm704 = vcmp.gt.f32.partialorder %v548, 0.5
    %vm705 = vcmp.gt.f32.partialorder %v567, 0.5
    %vm706 = vcmp.gt.f32.partialorder %v586, 0.5
    %vm707 = vcmp.gt.f32.partialorder %v605, 0.5
    %vm708 = vcmp.gt.f32.partialorder %v624, 0.5
    %vm709 = vcmp.gt.f32.partialorder %v643, 0.5
    %vm710 = vcmp.gt.f32.partialorder %v662, 0.5
    %vm711 = vcmp.gt.f32.partialorder %v531, 0.5
    %vm712 = vcmp.gt.f32.partialorder %v550, 0.5
    %vm713 = vcmp.gt.f32.partialorder %v569, 0.5
    %vm714 = vcmp.gt.f32.partialorder %v588, 0.5
    %vm715 = vcmp.gt.f32.partialorder %v607, 0.5
    %vm716 = vcmp.gt.f32.partialorder %v626, 0.5
    %vm717 = vcmp.gt.f32.partialorder %v645, 0.5
    %vm718 = vcmp.gt.f32.partialorder %v664, 0.5
    %vm719 = vcmp.gt.f32.partialorder %v534, 0.5
    %vm720 = vcmp.gt.f32.partialorder %v553, 0.5
    %vm721 = vcmp.gt.f32.partialorder %v572, 0.5
    %vm722 = vcmp.gt.f32.partialorder %v591, 0.5
    %vm723 = vcmp.gt.f32.partialorder %v610, 0.5
    %vm724 = vcmp.gt.f32.partialorder %v629, 0.5
    %vm725 = vcmp.gt.f32.partialorder %v648, 0.5
    %vm726 = vcmp.gt.f32.partialorder %v667, 0.5
    %vm727 = vcmp.gt.f32.partialorder %v536, 0.5
    %vm728 = vcmp.gt.f32.partialorder %v555, 0.5
    %vm729 = vcmp.gt.f32.partialorder %v574, 0.5
    %vm730 = vcmp.gt.f32.partialorder %v593, 0.5
    %vm731 = vcmp.gt.f32.partialorder %v612, 0.5
    %vm732 = vcmp.gt.f32.partialorder %v631, 0.5
    %vm733 = vcmp.gt.f32.partialorder %v650, 0.5
    %vm734 = vcmp.gt.f32.partialorder %v669, 0.5
    %vm735 = vmand %vm671, %vm703
    %vm736 = vmand %vm672, %vm704
    %vm737 = vmand %vm673, %vm705
    %vm738 = vmand %vm674, %vm706
    %vm739 = vmand %vm675, %vm707
    %vm740 = vmand %vm676, %vm708
    %vm741 = vmand %vm677, %vm709
    %vm742 = vmand %vm678, %vm710
    %vm743 = vmand %vm679, %vm711
    %vm744 = vmand %vm680, %vm712
    %vm745 = vmand %vm681, %vm713
    %vm746 = vmand %vm682, %vm714
    %vm747 = vmand %vm683, %vm715
    %vm748 = vmand %vm684, %vm716
    %vm749 = vmand %vm685, %vm717
    %vm750 = vmand %vm686, %vm718
    %vm751 = vmand %vm687, %vm719
    %vm752 = vmand %vm688, %vm720
    %vm753 = vmand %vm689, %vm721
    %vm754 = vmand %vm690, %vm722
    %vm755 = vmand %vm691, %vm723
    %vm756 = vmand %vm692, %vm724
    %vm757 = vmand %vm693, %vm725
    %vm758 = vmand %vm694, %vm726
    %vm759 = vmand %vm695, %vm727
    %vm760 = vmand %vm696, %vm728
    %vm761 = vmand %vm697, %vm729
    %vm762 = vmand %vm698, %vm730
    %vm763 = vmand %vm699, %vm731
    %vm764 = vmand %vm700, %vm732
    %vm765 = vmand %vm701, %vm733
    %vm766 = vmand %vm702, %vm734
    %vm767 = vmpackc.low %vm743, %vm735
    %vm768 = vmpackc.low %vm759, %vm751
    %v769 = vsel %vm767, 16711935, 0
    %v770 = vsel %vm768, 16711935, 0
    %v771 = vpack.c.b8 %v770, %v769
    %vm772 = vnez %v771
    %vm773 = vmpackc.low %vm744, %vm736
    %vm774 = vmpackc.low %vm760, %vm752
    %v775 = vsel %vm773, 16711935, 0
    %v776 = vsel %vm774, 16711935, 0
    %v777 = vpack.c.b8 %v776, %v775
    %vm778 = vnez %v777
    %vm779 = vmpackc.low %vm745, %vm737
    %vm780 = vmpackc.low %vm761, %vm753
    %v781 = vsel %vm779, 16711935, 0
    %v782 = vsel %vm780, 16711935, 0
    %v783 = vpack.c.b8 %v782, %v781
    %vm784 = vnez %v783
    %vm785 = vmpackc.low %vm746, %vm738
    %vm786 = vmpackc.low %vm762, %vm754
    %v787 = vsel %vm785, 16711935, 0
    %v788 = vsel %vm786, 16711935, 0
    %v789 = vpack.c.b8 %v788, %v787
    %vm790 = vnez %v789
    %vm791 = vmpackc.low %vm747, %vm739
    %vm792 = vmpackc.low %vm763, %vm755
    %v793 = vsel %vm791, 16711935, 0
    %v794 = vsel %vm792, 16711935, 0
    %v795 = vpack.c.b8 %v794, %v793
    %vm796 = vnez %v795
    %vm797 = vmpackc.low %vm748, %vm740
    %vm798 = vmpackc.low %vm764, %vm756
    %v799 = vsel %vm797, 16711935, 0
    %v800 = vsel %vm798, 16711935, 0
    %v801 = vpack.c.b8 %v800, %v799
    %vm802 = vnez %v801
    %vm803 = vmpackc.low %vm749, %vm741
    %vm804 = vmpackc.low %vm765, %vm757
    %v805 = vsel %vm803, 16711935, 0
    %v806 = vsel %vm804, 16711935, 0
    %v807 = vpack.c.b8 %v806, %v805
    %vm808 = vnez %v807
    %vm809 = vmpackc.low %vm750, %vm742
    %vm810 = vmpackc.low %vm766, %vm758
    %v811 = vsel %vm809, 16711935, 0
    %v812 = vsel %vm810, 16711935, 0
    %v813 = vpack.c.b8 %v812, %v811
    %vm814 = vnez %v813
    %v815 = vsel %vm772, 16843009, 0
    %v816 = vsel %vm778, 16843009, 0
    %v817 = vsel %vm784, 16843009, 0
    %v818 = vsel %vm790, 16843009, 0
    %v819 = vsel %vm796, 16843009, 0
    %v820 = vsel %vm802, 16843009, 0
    %v821 = vsel %vm808, 16843009, 0
    %v822 = vsel %vm814, 16843009, 0
    %823 = vst [vmem:[#allocation10] sm:$0xff] %v815
    %824 = vst [vmem:[#allocation10 + $0x8] sm:$0xff] %v816
    %825 = vst [vmem:[#allocation10 + $0x10] sm:$0xff] %v817
    %826 = vst [vmem:[#allocation10 + $0x18] sm:$0xff] %v818
    %827 = vst [vmem:[#allocation10 + $0x20] sm:$0xff] %v819
    %828 = vst [vmem:[#allocation10 + $0x28] sm:$0xff] %v820
    %829 = vst [vmem:[#allocation10 + $0x30] sm:$0xff] %v821
    %830 = vst [vmem:[#allocation10 + $0x38] sm:$0xff] %v822
    // Predicated region
    $region34: #{tpu_custom_call.1} parent=1 // pred_check
      _
    $region35: #{tpu_custom_call.1} parent=1 // pred_check_branch
      %832 = sbr.rel (0) target = $region37
    $region36: #{tpu_custom_call.1} parent=1 // pred_region
      %834 = vsyncadd [#allocation4], 0
      %s836 = sshll.u32 [#allocation10], 4
      %s837 = int_to_ptr.vmem [resolvable:$true] %s836
      %s838 = sshll.u32 %s4, 4
      %s839 = int_to_ptr.hbm [resolvable:$true] %s838
      %841 = dma.vmem_to_hbm [thread:$0]  %s837, 1024, %s839, [#allocation4]
    $region37: #{tpu_custom_call.1} parent=1 // pred_fallthru
      _
    // Predicated region
    $region38: #{tpu_custom_call.1} parent=1 // pred_check
      _
    $region39: #{tpu_custom_call.1} parent=1 // pred_check_branch
      %843 = sbr.rel (0) target = $region41
    $region40: #{tpu_custom_call.1} parent=1 // pred_region
      %845 = dma.done [#allocation4], 1024
    $region41: #{tpu_custom_call.1} parent=1 // pred_fallthru
      _
    %846 = vsyncpa [#allocation3], 1
    %847 = vsyncpa [#allocation6], 1
    %848 = vsyncpa [#allocation9], 1
    %849 = vsyncpa [#allocation4], 1

</llo_original>
